<compile_context>
chip_gen: v6e
topology: v6e:2x2x1
jax: 0.10.0
libtpu: 0.0.40
codegen_flags: <defaults>
</compile_context>

<pallas_src>
import functools
import math

import jax
import jax.numpy as jnp
from jax import lax
from jax.experimental import pallas as pl
from jax.experimental.pallas import tpu as pltpu

LANE = 128  # TPU lane width; output projection padded to a multiple of this.


def decoder_layer_kernel(x_ref, wqkv_ref, bqkv_ref, wf_ref, bf_ref, o_ref, *, hidden_dim):
    """One batch element: fused QKV proj -> softmax(q k^T) * v -> padded out proj."""
    x = x_ref[...]                                                      # (S, H)

    # Fused Q/K/V projection: one MXU matmul filling 3H lanes + one bias add.
    qkv = jnp.dot(x, wqkv_ref[...], preferred_element_type=jnp.float32) + bqkv_ref[...]
    q = qkv[:, :hidden_dim]                    # 1/sqrt(H) already folded into Wq / bq
    k = qkv[:, hidden_dim:2 * hidden_dim]
    v = qkv[:, 2 * hidden_dim:]

    # scores = q @ k^T without materializing a transpose (contract k's last dim).
    scores = lax.dot_general(q, k, dimension_numbers=(((1,), (1,)), ((), ())),
                             preferred_element_type=jnp.float32)        # (S, S)

    # dropout(p=0.1) -> identity at inference time.

    # Numerically stable softmax over the last dim; reciprocal goes to the EUP.
    m = jnp.max(scores, axis=-1, keepdims=True)
    e = jnp.exp(scores - m)
    denom = jnp.sum(e, axis=-1, keepdims=True)
    weights = e * pl.reciprocal(denom, approx=True)                     # (S, S)

    # WARNING: elementwise product per the quirky PyTorch reference (needs S == H).
    attn = weights * v                                                  # (S, H)

    # Output projection; Wf/bf are zero-padded to LANE columns -> unmasked lane-dense store.
    out = jnp.dot(attn, wf_ref[...], preferred_element_type=jnp.float32) + bf_ref[...]
    o_ref[...] = out.astype(o_ref.dtype)


def prepare_params(params):
    """One-time layout work: transpose to (in,out), fuse QKV, fold 1/sqrt(H), pad out proj."""
    H = params["wq"].shape[1]
    O = params["wf"].shape[0]
    scale = jnp.float32(1.0 / math.sqrt(H))
    wqkv = jnp.concatenate(
        [params["wq"].T * scale, params["wk"].T, params["wv"].T], axis=1)        # (H, 3H)
    bqkv = jnp.concatenate(
        [params["bq"] * scale, params["bk"], params["bv"]]).reshape(1, 3 * H)    # (1, 3H)
    o_pad = max(LANE, -(-O // LANE) * LANE)
    wf_pad = jnp.zeros((H, o_pad), jnp.float32).at[:, :O].set(params["wf"].T)    # (H, OPAD)
    bf_pad = jnp.zeros((1, o_pad), jnp.float32).at[:, :O].set(params["bf"])      # (1, OPAD)
    return {"wqkv": wqkv, "bqkv": bqkv, "wf_pad": wf_pad, "bf_pad": bf_pad, "o_dim": O}


def transformer_decoder_layer(encoder_output, prepared):
    B, S, H = encoder_output.shape
    assert S == H, "reference semantics (weights * value after q @ k.T) require seq == hidden"
    O = prepared["o_dim"]
    o_pad = prepared["wf_pad"].shape[1]

    kernel = functools.partial(decoder_layer_kernel, hidden_dim=H)

    out_padded = pl.pallas_call(
        kernel,
        grid=(B,),
        in_specs=[
            pl.BlockSpec((None, S, H), lambda b: (b, 0, 0)),   # x[b]      (batch-sliced)
            pl.BlockSpec((H, 3 * H), lambda b: (0, 0)),        # fused Wqkv (resident)
            pl.BlockSpec((1, 3 * H), lambda b: (0, 0)),        # fused bqkv (resident)
            pl.BlockSpec((H, o_pad), lambda b: (0, 0)),        # Wf, lane-padded
            pl.BlockSpec((1, o_pad), lambda b: (0, 0)),        # bf, lane-padded
        ],
        out_specs=pl.BlockSpec((None, S, o_pad), lambda b: (b, 0, 0)),
        out_shape=jax.ShapeDtypeStruct((B, S, o_pad), encoder_output.dtype),
        compiler_params=pltpu.CompilerParams(
            dimension_semantics=("parallel",)),   # shard batch across TCs (v7x)
    )(encoder_output, prepared["wqkv"], prepared["bqkv"],
      prepared["wf_pad"], prepared["bf_pad"])

    return out_padded[..., :O]


def init_params(key, hidden_dim, output_dim):
    ks = jax.random.split(key, 8)
    lim_h = 1.0 / math.sqrt(hidden_dim)
    return {
        "wq": jax.random.uniform(ks[0], (hidden_dim, hidden_dim), jnp.float32, -lim_h, lim_h),
        "bq": jax.random.uniform(ks[1], (hidden_dim,), jnp.float32, -lim_h, lim_h),
        "wk": jax.random.uniform(ks[2], (hidden_dim, hidden_dim), jnp.float32, -lim_h, lim_h),
        "bk": jax.random.uniform(ks[3], (hidden_dim,), jnp.float32, -lim_h, lim_h),
        "wv": jax.random.uniform(ks[4], (hidden_dim, hidden_dim), jnp.float32, -lim_h, lim_h),
        "bv": jax.random.uniform(ks[5], (hidden_dim,), jnp.float32, -lim_h, lim_h),
        "wf": jax.random.uniform(ks[6], (output_dim, hidden_dim), jnp.float32, -lim_h, lim_h),
        "bf": jax.random.uniform(ks[7], (output_dim,), jnp.float32, -lim_h, lim_h),
    }


if __name__ == "__main__":
    hidden_dim = 32
    output_dim = 16
    seq = hidden_dim   # required by the reference's `weights * value` semantics
    batch = 8          # independent sequences, swept by the parallel grid axis

    key = jax.random.PRNGKey(0)
    k_in, k_par = jax.random.split(key)
    encoder_output = jax.random.normal(k_in, (batch, seq, hidden_dim), jnp.float32)
    params = init_params(k_par, hidden_dim, output_dim)
    prepared = prepare_params(params)   # one-time layout prep (transpose/fuse/scale/pad)

    out = transformer_decoder_layer(encoder_output, prepared)
    out = jax.block_until_ready(out)

    # Pure-JAX reference of the same (inference) semantics.
    q = encoder_output @ params["wq"].T + params["bq"]
    k = encoder_output @ params["wk"].T + params["bk"]
    v = encoder_output @ params["wv"].T + params["bv"]
    scores = jnp.einsum("bsh,bth->bst", q, k) / math.sqrt(hidden_dim)
    weights = jax.nn.softmax(scores, axis=-1)
    ref = (weights * v) @ params["wf"].T + params["bf"]

    assert out.shape == (batch, seq, output_dim)
    assert jnp.allclose(out, ref, atol=1e-3, rtol=1e-3), float(jnp.max(jnp.abs(out - ref)))

    print("KERNEL_OK")
</pallas_src>

<mosaic_0001>
module attributes {stable_mosaic.version = 11 : i64} {
  func.func @decoder_layer_kernel(%arg0: i32, %arg1: memref<1x32x32xf32, #tpu.memory_space<vmem>>, %arg2: memref<32x96xf32, #tpu.memory_space<vmem>>, %arg3: memref<1x96xf32, #tpu.memory_space<vmem>>, %arg4: memref<32x128xf32, #tpu.memory_space<vmem>>, %arg5: memref<1x128xf32, #tpu.memory_space<vmem>>, %arg6: memref<1x32x128xf32, #tpu.memory_space<vmem>>) attributes {dimension_semantics = [#tpu.dimension_semantics<parallel>], iteration_bounds = array<i64: 8>, scalar_prefetch = 0 : i64, scratch_operands = 0 : i64, tpu.core_type = #tpu.core_type<tc>, window_params = [{transform_indices = @transform_0, window_bounds = array<i64: 1, 32, 32>}, {pipeline_mode = #tpu.pipeline_mode<synchronous>, transform_indices = @transform_1, window_bounds = array<i64: 32, 96>}, {pipeline_mode = #tpu.pipeline_mode<synchronous>, transform_indices = @transform_2, window_bounds = array<i64: 1, 96>}, {pipeline_mode = #tpu.pipeline_mode<synchronous>, transform_indices = @transform_3, window_bounds = array<i64: 32, 128>}, {pipeline_mode = #tpu.pipeline_mode<synchronous>, transform_indices = @transform_4, window_bounds = array<i64: 1, 128>}, {transform_indices = @transform_5, window_bounds = array<i64: 1, 32, 128>}]} {
    %c0 = arith.constant 0 : index
    %c0_0 = arith.constant 0 : index
    %c0_1 = arith.constant 0 : index
    %0 = vector.load %arg1[%c0, %c0_0, %c0_1] : memref<1x32x32xf32, #tpu.memory_space<vmem>>, vector<1x32x32xf32>
    %1 = vector.shape_cast %0 : vector<1x32x32xf32> to vector<32x32xf32>
    %c0_2 = arith.constant 0 : index
    %c0_3 = arith.constant 0 : index
    %2 = vector.load %arg2[%c0_2, %c0_3] : memref<32x96xf32, #tpu.memory_space<vmem>>, vector<32x96xf32>
    %cst = arith.constant dense<0.000000e+00> : vector<32x96xf32>
    %3 = tpu.matmul %1, %2, %cst {dimension_numbers = #tpu.dot_dimension_numbers<[1], [0], [0], [1], [0, 0, 1, 1], [], []>} : vector<32x32xf32>, vector<32x96xf32>, vector<32x96xf32> -> vector<32x96xf32>
    %c0_4 = arith.constant 0 : index
    %c0_5 = arith.constant 0 : index
    %4 = vector.load %arg3[%c0_4, %c0_5] : memref<1x96xf32, #tpu.memory_space<vmem>>, vector<1x96xf32>
    %5 = vector.broadcast %4 : vector<1x96xf32> to vector<32x96xf32>
    %6 = arith.addf %3, %5 : vector<32x96xf32>
    %7 = vector.extract_strided_slice %6 {offsets = [0, 0], sizes = [32, 32], strides = [1, 1]} : vector<32x96xf32> to vector<32x32xf32>
    %8 = vector.extract_strided_slice %6 {offsets = [0, 32], sizes = [32, 32], strides = [1, 1]} : vector<32x96xf32> to vector<32x32xf32>
    %9 = vector.extract_strided_slice %6 {offsets = [0, 64], sizes = [32, 32], strides = [1, 1]} : vector<32x96xf32> to vector<32x32xf32>
    %cst_6 = arith.constant dense<0.000000e+00> : vector<32x32xf32>
    %10 = tpu.matmul %7, %8, %cst_6 {dimension_numbers = #tpu.dot_dimension_numbers<[1], [1], [0], [0], [0, 0, 1, 0], [], []>} : vector<32x32xf32>, vector<32x32xf32>, vector<32x32xf32> -> vector<32x32xf32>
    %cst_7 = arith.constant dense<0xFF800000> : vector<32xf32>
    %11 = vector.multi_reduction <maximumf>, %10, %cst_7 [1] : vector<32x32xf32> to vector<32xf32>
    %12 = vector.shape_cast %11 : vector<32xf32> to vector<32x1xf32>
    %13 = vector.broadcast %12 : vector<32x1xf32> to vector<32x32xf32>
    %14 = arith.subf %10, %13 : vector<32x32xf32>
    %15 = math.exp %14 : vector<32x32xf32>
    %cst_8 = arith.constant dense<0.000000e+00> : vector<32xf32>
    %16 = vector.multi_reduction <add>, %15, %cst_8 [1] : vector<32x32xf32> to vector<32xf32>
    %17 = vector.shape_cast %16 : vector<32xf32> to vector<32x1xf32>
    %18 = tpu.reciprocal %17 {approx = true} : vector<32x1xf32> -> vector<32x1xf32>
    %19 = vector.broadcast %18 : vector<32x1xf32> to vector<32x32xf32>
    %20 = arith.mulf %15, %19 : vector<32x32xf32>
    %21 = arith.mulf %20, %9 : vector<32x32xf32>
    %c0_9 = arith.constant 0 : index
    %c0_10 = arith.constant 0 : index
    %22 = vector.load %arg4[%c0_9, %c0_10] : memref<32x128xf32, #tpu.memory_space<vmem>>, vector<32x128xf32>
    %cst_11 = arith.constant dense<0.000000e+00> : vector<32x128xf32>
    %23 = tpu.matmul %21, %22, %cst_11 {dimension_numbers = #tpu.dot_dimension_numbers<[1], [0], [0], [1], [0, 0, 1, 1], [], []>} : vector<32x32xf32>, vector<32x128xf32>, vector<32x128xf32> -> vector<32x128xf32>
    %c0_12 = arith.constant 0 : index
    %c0_13 = arith.constant 0 : index
    %24 = vector.load %arg5[%c0_12, %c0_13] : memref<1x128xf32, #tpu.memory_space<vmem>>, vector<1x128xf32>
    %25 = vector.broadcast %24 : vector<1x128xf32> to vector<32x128xf32>
    %26 = arith.addf %23, %25 : vector<32x128xf32>
    %c0_14 = arith.constant 0 : index
    %c0_15 = arith.constant 0 : index
    %c0_16 = arith.constant 0 : index
    %27 = vector.load %arg6[%c0_14, %c0_15, %c0_16] : memref<1x32x128xf32, #tpu.memory_space<vmem>>, vector<1x32x128xf32>
    %28 = vector.shape_cast %27 : vector<1x32x128xf32> to vector<32x128xf32>
    %29 = vector.shape_cast %26 : vector<32x128xf32> to vector<1x32x128xf32>
    tpu.vector_store %arg6[%c0_14, %c0_15, %c0_16], %29 {strides = array<i32>} : memref<1x32x128xf32, #tpu.memory_space<vmem>>, vector<1x32x128xf32>,
    return
  }
  func.func @transform_0(%arg0: i32) -> (i32, i32, i32) {
    %c0_i32 = arith.constant 0 : i32
    %c0_i32_0 = arith.constant 0 : i32
    %c0_i32_1 = arith.constant 0 : i32
    return %arg0, %c0_i32, %c0_i32_0 : i32, i32, i32
  }
  func.func @transform_1(%arg0: i32) -> (i32, i32) {
    %c0_i32 = arith.constant 0 : i32
    %c0_i32_0 = arith.constant 0 : i32
    %c0_i32_1 = arith.constant 0 : i32
    return %c0_i32, %c0_i32_0 : i32, i32
  }
  func.func @transform_2(%arg0: i32) -> (i32, i32) {
    %c0_i32 = arith.constant 0 : i32
    %c0_i32_0 = arith.constant 0 : i32
    %c0_i32_1 = arith.constant 0 : i32
    return %c0_i32, %c0_i32_0 : i32, i32
  }
  func.func @transform_3(%arg0: i32) -> (i32, i32) {
    %c0_i32 = arith.constant 0 : i32
    %c0_i32_0 = arith.constant 0 : i32
    %c0_i32_1 = arith.constant 0 : i32
    return %c0_i32, %c0_i32_0 : i32, i32
  }
  func.func @transform_4(%arg0: i32) -> (i32, i32) {
    %c0_i32 = arith.constant 0 : i32
    %c0_i32_0 = arith.constant 0 : i32
    %c0_i32_1 = arith.constant 0 : i32
    return %c0_i32, %c0_i32_0 : i32, i32
  }
  func.func @transform_5(%arg0: i32) -> (i32, i32, i32) {
    %c0_i32 = arith.constant 0 : i32
    %c0_i32_0 = arith.constant 0 : i32
    %c0_i32_1 = arith.constant 0 : i32
    return %arg0, %c0_i32, %c0_i32_0 : i32, i32, i32
  }
}

</mosaic_0001>

<llo_original>
// kernel: tpu_custom_call.1
$region0: #{tpu_custom_call.1}
  #allocation0 [shape = 'u32[]', space=smem, size = 0x4, offset = 0x4, fixed_abs, tag = 'smem constant byte address 0x4 - core index']
  #allocation1 [shape = 'u32[144,128]{1,0:T(1,128)}', space=vmem, size = 0x12000, scoped, tag = 'internal scratch']
  %s0 = inlined_call_operand.hbm [shape: f32[8,32,32], index: 0, kind: input, shape index: {}]
  %s1 = inlined_call_operand.hbm [shape: f32[32,96], index: 1, kind: input, shape index: {}]
  %s2 = inlined_call_operand.vmem [shape: f32[1,96], index: 2, kind: input, shape index: {}]
  %s3 = inlined_call_operand.hbm [shape: f32[32,128], index: 3, kind: input, shape index: {}]
  %s4 = inlined_call_operand.vmem [shape: f32[1,128], index: 4, kind: input, shape index: {}]
  %s5 = inlined_call_operand.hbm [shape: f32[8,32,128], index: 5, kind: output, shape index: {}]
  %s6 = sld [smem:[#allocation0]]
  $region65: #{tpu_custom_call.1} parent=0
    _
  %s8 = ssub.s32 1, %s6
  %s9 = scalar_select 0, %s8, %s6
  $region1: #{tpu_custom_call.1} parent=0
    #allocation2 [shape = 'u8[32768]{0}', space=vmem, size = 0x8000, scoped, tag = 'input window, operand 0']
    #allocation3 [shape = 's32[2]{0}', space=sflag, size = 0x8, scoped, tag = 'scoped memory for tpu_custom_call.1']
    #allocation4 [shape = 's32[2]{0}', space=sflag, size = 0x8, scoped, tag = 'scoped memory for tpu_custom_call.1']
    #allocation5 [shape = 'u8[16384]{0}', space=vmem, size = 0x4000, scoped, tag = 'input window, operand 1, single buffered']
    #allocation6 [shape = 's32[1]{0}', space=sflag, size = 0x4, scoped, tag = 'scoped memory for tpu_custom_call.1']
    #allocation7 [shape = 'u8[16384]{0}', space=vmem, size = 0x4000, scoped, tag = 'input window, operand 3, single buffered']
    #allocation8 [shape = 'u8[32768]{0}', space=vmem, size = 0x8000, scoped, tag = 'output window, operand 0']
    %10 = vsyncpa [#allocation3], 0
    %s11 = scalar_lea.sflag [#allocation3], 1
    %12 = vsyncpa %s11, 0
    %13 = vsyncpa [#allocation6], 0
    %14 = vsyncpa [#allocation4], 0
    %s15 = scalar_lea.sflag [#allocation4], 1
    %16 = vsyncpa %s15, 0
    loop: start=0, step=1, limit=10
    $region2: #{tpu_custom_call.1} parent=1 // loop_pre_header
      _
    $region3: #{tpu_custom_call.1} parent=1 // loop_header
      %s18 = sphi 0, %s22
      %p19 = scmp.ge.s32.totalorder %s18, 10
      %s28 = sphi 0, %s30
      %s31 = sphi 0, %s28
      %s32 = sphi 0, %s31
      %s48 = sphi 0, %s32
      %s52 = sphi 0, %s52
      %s54 = sphi 0, %s52
      %s55 = sphi 0, %s54
      %s69 = sphi 0, %s55
      %s73 = sphi 0, %s73
      %s75 = sphi 0, %s73
      %s76 = sphi 0, %s75
      %s90 = sphi 0, %s76
      %s94 = sphi 0, %s94
      %s96 = sphi 0, %s94
      %s97 = sphi 0, %s96
      %s111 = sphi 0, %s97
      %s115 = sphi 0, %s115
      %s117 = sphi 0, %s115
      %s118 = sphi 0, %s117
      %s132 = sphi 0, %s118
      %s138 = sphi 0, %s140
      %s141 = sphi 0, %s138
      %s142 = sphi 0, %s141
      %s158 = sphi 0, %s142
    $region4: #{tpu_custom_call.1} parent=1 // loop_header_branch
      %21 = sbr.rel (%p19) target = $region8
    $region5: #{tpu_custom_call.1} parent=1 // loop_body
      %s23 = ssub.s32 %s18, 1
      %s24 = ssub.s32 %s18, 2
      %s25 = sadd.s32 %s18, 1
      %s26 = ssub.s32 %s18, %s25
      %p27 = scmp.eq.s32.totalorder %s26, 0
      %s29 = sadd.s32 %s28, 1
      %s30 = scalar_select %p27, %s28, %s29
      %p33 = pneg %p27
      %p34 = scmp.eq.s32.totalorder %s18, 7
      %p35 = por %p33, %p34
      %p36 = scmp.ne.s32.totalorder %s28, %s31
      %p37 = scmp.eq.s32.totalorder %s18, 0
      %p38 = por %p36, %p37
      %p39 = scmp.ne.s32.totalorder %s28, %s31
      %p40 = scmp.eq.s32.totalorder %s23, 7
      %p41 = por %p39, %p40
      %p42 = scmp.ne.s32.totalorder %s31, %s32
      %p43 = scmp.eq.s32.totalorder %s23, 0
      %p44 = por %p42, %p43
      %p45 = scmp.ne.s32.totalorder %s31, %s32
      %p46 = scmp.eq.s32.totalorder %s24, 7
      %p47 = por %p45, %p46
      %p49 = scmp.ne.s32.totalorder %s32, %s48
      %p50 = scmp.eq.s32.totalorder %s24, 0
      %p51 = por %p49, %p50
      %s53 = sadd.s32 %s52, 1
      %p56 = scmp.eq.s32.totalorder %s18, 7
      %p57 = scmp.ne.s32.totalorder %s52, %s54
      %p58 = scmp.eq.s32.totalorder %s18, 0
      %p59 = por %p57, %p58
      %p60 = scmp.ne.s32.totalorder %s52, %s54
      %p61 = scmp.eq.s32.totalorder %s23, 7
      %p62 = por %p60, %p61
      %p63 = scmp.ne.s32.totalorder %s54, %s55
      %p64 = scmp.eq.s32.totalorder %s23, 0
      %p65 = por %p63, %p64
      %p66 = scmp.ne.s32.totalorder %s54, %s55
      %p67 = scmp.eq.s32.totalorder %s24, 7
      %p68 = por %p66, %p67
      %p70 = scmp.ne.s32.totalorder %s55, %s69
      %p71 = scmp.eq.s32.totalorder %s24, 0
      %p72 = por %p70, %p71
      %s74 = sadd.s32 %s73, 1
      %p77 = scmp.eq.s32.totalorder %s18, 7
      %p78 = scmp.ne.s32.totalorder %s73, %s75
      %p79 = scmp.eq.s32.totalorder %s18, 0
      %p80 = por %p78, %p79
      %p81 = scmp.ne.s32.totalorder %s73, %s75
      %p82 = scmp.eq.s32.totalorder %s23, 7
      %p83 = por %p81, %p82
      %p84 = scmp.ne.s32.totalorder %s75, %s76
      %p85 = scmp.eq.s32.totalorder %s23, 0
      %p86 = por %p84, %p85
      %p87 = scmp.ne.s32.totalorder %s75, %s76
      %p88 = scmp.eq.s32.totalorder %s24, 7
      %p89 = por %p87, %p88
      %p91 = scmp.ne.s32.totalorder %s76, %s90
      %p92 = scmp.eq.s32.totalorder %s24, 0
      %p93 = por %p91, %p92
      %s95 = sadd.s32 %s94, 1
      %p98 = scmp.eq.s32.totalorder %s18, 7
      %p99 = scmp.ne.s32.totalorder %s94, %s96
      %p100 = scmp.eq.s32.totalorder %s18, 0
      %p101 = por %p99, %p100
      %p102 = scmp.ne.s32.totalorder %s94, %s96
      %p103 = scmp.eq.s32.totalorder %s23, 7
      %p104 = por %p102, %p103
      %p105 = scmp.ne.s32.totalorder %s96, %s97
      %p106 = scmp.eq.s32.totalorder %s23, 0
      %p107 = por %p105, %p106
      %p108 = scmp.ne.s32.totalorder %s96, %s97
      %p109 = scmp.eq.s32.totalorder %s24, 7
      %p110 = por %p108, %p109
      %p112 = scmp.ne.s32.totalorder %s97, %s111
      %p113 = scmp.eq.s32.totalorder %s24, 0
      %p114 = por %p112, %p113
      %s116 = sadd.s32 %s115, 1
      %p119 = scmp.eq.s32.totalorder %s18, 7
      %p120 = scmp.ne.s32.totalorder %s115, %s117
      %p121 = scmp.eq.s32.totalorder %s18, 0
      %p122 = por %p120, %p121
      %p123 = scmp.ne.s32.totalorder %s115, %s117
      %p124 = scmp.eq.s32.totalorder %s23, 7
      %p125 = por %p123, %p124
      %p126 = scmp.ne.s32.totalorder %s117, %s118
      %p127 = scmp.eq.s32.totalorder %s23, 0
      %p128 = por %p126, %p127
      %p129 = scmp.ne.s32.totalorder %s117, %s118
      %p130 = scmp.eq.s32.totalorder %s24, 7
      %p131 = por %p129, %p130
      %p133 = scmp.ne.s32.totalorder %s118, %s132
      %p134 = scmp.eq.s32.totalorder %s24, 0
      %p135 = por %p133, %p134
      %s136 = ssub.s32 %s18, %s25
      %p137 = scmp.eq.s32.totalorder %s136, 0
      %s139 = sadd.s32 %s138, 1
      %s140 = scalar_select %p137, %s138, %s139
      %p143 = pneg %p137
      %p144 = scmp.eq.s32.totalorder %s18, 7
      %p145 = por %p143, %p144
      %p146 = scmp.ne.s32.totalorder %s138, %s141
      %p147 = scmp.eq.s32.totalorder %s18, 0
      %p148 = por %p146, %p147
      %p149 = scmp.ne.s32.totalorder %s138, %s141
      %p150 = scmp.eq.s32.totalorder %s23, 7
      %p151 = por %p149, %p150
      %p152 = scmp.ne.s32.totalorder %s141, %s142
      %p153 = scmp.eq.s32.totalorder %s23, 0
      %p154 = por %p152, %p153
      %p155 = scmp.ne.s32.totalorder %s141, %s142
      %p156 = scmp.eq.s32.totalorder %s24, 7
      %p157 = por %p155, %p156
      %p159 = scmp.ne.s32.totalorder %s142, %s158
      %p160 = scmp.eq.s32.totalorder %s24, 0
      %p161 = por %p159, %p160
      %p162 = scmp.le.s32.totalorder 1, %s18
      %p163 = scmp.lt.s32.totalorder %s18, 9
      %p164 = pnand %p162, %p163
      %p165 = pneg %p164
      // Predicated region
      $region9: #{tpu_custom_call.1} parent=5 // pred_check
        _
      $region10: #{tpu_custom_call.1} parent=5 // pred_check_branch
        %167 = sbr.rel (%p164) target = $region12
      $region11: #{tpu_custom_call.1} parent=5 // pred_region
        %s168 = ssub.s32 %s18, 1
        // Predicated region
        $region13: #{tpu_custom_call.1} parent=11 // pred_check
          %p169 = pneg %p65
        $region14: #{tpu_custom_call.1} parent=11 // pred_check_branch
          %171 = sbr.rel (%p169) target = $region16
        $region15: #{tpu_custom_call.1} parent=11 // pred_region
          %s173 = ssub.s32 512, 512
          %174 = vsyncadd [#allocation6], %s173
          %s175 = sshll.u32 [#allocation5], 4
          %s176 = int_to_ptr.vmem [resolvable:$true] %s175
          %181 = dma.hbm_to_vmem [thread:$0]  %s1, 512, %s176, [#allocation6], 128, 128, 8
        $region16: #{tpu_custom_call.1} parent=11 // pred_fallthru
          _
        // Predicated region
        $region17: #{tpu_custom_call.1} parent=11 // pred_check
          %p182 = pneg %p86
        $region18: #{tpu_custom_call.1} parent=11 // pred_check_branch
          %184 = sbr.rel (%p182) target = $region20
        $region19: #{tpu_custom_call.1} parent=11 // pred_region
          _
        $region20: #{tpu_custom_call.1} parent=11 // pred_fallthru
          _
        // Predicated region
        $region21: #{tpu_custom_call.1} parent=11 // pred_check
          %p185 = pneg %p107
        $region22: #{tpu_custom_call.1} parent=11 // pred_check_branch
          %187 = sbr.rel (%p185) target = $region24
        $region23: #{tpu_custom_call.1} parent=11 // pred_region
          %s189 = ssub.s32 512, 512
          %190 = vsyncadd [#allocation6], %s189
          %s191 = sshll.u32 [#allocation7], 4
          %s192 = int_to_ptr.vmem [resolvable:$true] %s191
          %197 = dma.hbm_to_vmem [thread:$0]  %s3, 512, %s192, [#allocation6], 128, 128, 8
        $region24: #{tpu_custom_call.1} parent=11 // pred_fallthru
          _
        // Predicated region
        $region25: #{tpu_custom_call.1} parent=11 // pred_check
          %p198 = pneg %p128
        $region26: #{tpu_custom_call.1} parent=11 // pred_check_branch
          %200 = sbr.rel (%p198) target = $region28
        $region27: #{tpu_custom_call.1} parent=11 // pred_region
          _
        $region28: #{tpu_custom_call.1} parent=11 // pred_fallthru
          _
      $region12: #{tpu_custom_call.1} parent=5 // pred_fallthru
        _
      %p201 = scmp.lt.s32.totalorder %s18, 8
      // Predicated region
      $region29: #{tpu_custom_call.1} parent=5 // pred_check
        %p202 = pneg %p201
      $region30: #{tpu_custom_call.1} parent=5 // pred_check_branch
        %204 = sbr.rel (%p202) target = $region32
      $region31: #{tpu_custom_call.1} parent=5 // pred_region
        // Predicated region
        $region33: #{tpu_custom_call.1} parent=31 // pred_check
          %p205 = pneg %p38
        $region34: #{tpu_custom_call.1} parent=31 // pred_check_branch
          %207 = sbr.rel (%p205) target = $region36
        $region35: #{tpu_custom_call.1} parent=31 // pred_region
          %s208 = sand.u32 %s28, 1
          %s209 = scalar_lea.sflag [#allocation3], %s208
          %s210 = sand.u32 %s28, 1
          %s211 = smul.addr %s210, 32
          %s212 = scalar_lea.vmem [#allocation2], %s211
          %s214 = ssub.s32 512, 512
          %215 = vsyncadd %s209, %s214
          %s216 = smul.addr %s18, 4
          %s217 = smul.addr %s216, 128
          %s218 = scalar_lea.hbm %s0, %s217
          %s219 = sshll.u32 %s212, 4
          %s220 = int_to_ptr.vmem [resolvable:$true] %s219
          %225 = dma.hbm_to_vmem [thread:$0]  %s218, 512, %s220, %s209, 128, 128, 8
        $region36: #{tpu_custom_call.1} parent=31 // pred_fallthru
          _
      $region32: #{tpu_custom_call.1} parent=5 // pred_fallthru
        _
      %p226 = scmp.le.s32.totalorder 1, %s18
      %p227 = scmp.lt.s32.totalorder %s18, 9
      %p228 = pnand %p226, %p227
      %p229 = pneg %p228
      // Predicated region
      $region37: #{tpu_custom_call.1} parent=5 // pred_check
        _
      $region38: #{tpu_custom_call.1} parent=5 // pred_check_branch
        %231 = sbr.rel (%p228) target = $region40
      $region39: #{tpu_custom_call.1} parent=5 // pred_region
        %s232 = ssub.s32 %s18, 1
        %s233 = sand.u32 %s31, 1
        %s234 = scalar_lea.sflag [#allocation3], %s233
        %s235 = sand.u32 %s31, 1
        %s236 = smul.addr %s235, 32
        %s237 = scalar_lea.vmem [#allocation2], %s236
        // Predicated region
        $region41: #{tpu_custom_call.1} parent=39 // pred_check
          %p238 = pneg %p44
        $region42: #{tpu_custom_call.1} parent=39 // pred_check_branch
          %240 = sbr.rel (%p238) target = $region44
        $region43: #{tpu_custom_call.1} parent=39 // pred_region
          %241 = dma.done %s234, 512
        $region44: #{tpu_custom_call.1} parent=39 // pred_fallthru
          _
        // Predicated region
        $region45: #{tpu_custom_call.1} parent=39 // pred_check
          %p242 = pneg %p65
        $region46: #{tpu_custom_call.1} parent=39 // pred_check_branch
          %244 = sbr.rel (%p242) target = $region48
        $region47: #{tpu_custom_call.1} parent=39 // pred_region
          %245 = dma.done [#allocation6], 512
        $region48: #{tpu_custom_call.1} parent=39 // pred_fallthru
          _
        // Predicated region
        $region49: #{tpu_custom_call.1} parent=39 // pred_check
          %p246 = pneg %p107
        $region50: #{tpu_custom_call.1} parent=39 // pred_check_branch
          %248 = sbr.rel (%p246) target = $region52
        $region51: #{tpu_custom_call.1} parent=39 // pred_region
          %249 = dma.done [#allocation6], 512
        $region52: #{tpu_custom_call.1} parent=39 // pred_fallthru
          _
        %s250 = sand.u32 %s31, 1
        %s251 = scalar_lea.sflag [#allocation3], %s250
        %s252 = sand.u32 %s31, 1
        %s253 = smul.addr %s252, 32
        %s254 = scalar_lea.vmem [#allocation2], %s253
        %p255 = pneg %p44
        %p256 = pneg %p41
        %p257 = pneg %p65
        %p258 = pneg %p62
        %p259 = pneg %p86
        %p260 = pneg %p83
        %p261 = pneg %p107
        %p262 = pneg %p104
        %p263 = pneg %p128
        %p264 = pneg %p125
        %p265 = pneg %p154
        %p266 = pneg %p151
        %s267 = sand.u32 %s141, 1
        %s268 = scalar_lea.sflag [#allocation4], %s267
        %s269 = sand.u32 %s141, 1
        %s270 = smul.addr %s269, 32
        %s271 = scalar_lea.vmem [#allocation8], %s270
        %v272 = vld [vmem:[%s237] sm:$0xff]
        %v273 = vld [vmem:[%s237 + $0x8] sm:$0xff]
        %v274 = vld [vmem:[%s237 + $0x10] sm:$0xff]
        %v275 = vld [vmem:[%s237 + $0x18] sm:$0xff]
        %v276 = vld [vmem:[#allocation5] sm:$0xff]
        %v277 = vld [vmem:[#allocation5 + $0x8] sm:$0xff]
        %v278 = vld [vmem:[#allocation5 + $0x10] sm:$0xff]
        %v279 = vld [vmem:[#allocation5 + $0x18] sm:$0xff]
        %v280 = vld [vmem:[%s2] sm:$0x1]
        %v282 = vlaneseq
        %v283 = vshrl.u32 %v282, 7
        %v284 = vsub.s32 0, %v283
        %v285 = vrot.slane %v280, %v284
        %vm287 = vcmask 261120
        %v289 = vsel %vm287, %v272, 0
        %v292 = vsel %vm287, %v273, 0
        %v295 = vsel %vm287, %v274, 0
        %v298 = vsel %vm287, %v275, 0
        %300 = vmatprep.subr.mxu0 0.0
        %301 = vmatpush1.msra.mxu0 0.0
        %302 = vmatprep.subr.mxu0 0.0
        %303 = vmatpush1.msra.mxu0 0.0
        %304 = vmatprep.subr.mxu0 0.0
        %305 = vmatpush1.msra.mxu0 0.0
        %306 = vmatprep.subr.mxu0 0.0
        %307 = vmatpush1.msra.mxu0 0.0
        %308 = vmatprep.subr.mxu0 0.0
        %309 = vmatpush1.msra.mxu0 0.0
        %310 = vmatprep.subr.mxu0 0.0
        %311 = vmatpush1.msra.mxu0 0.0
        %312 = vmatprep.subr.mxu0 0.0
        %313 = vmatpush1.msra.mxu0 0.0
        %314 = vmatprep.subr.mxu0 0.0
        %315 = vmatpush1.msra.mxu0 0.0
        %316 = vmatprep.subr.mxu0 0.0
        %317 = vmatpush1.msra.mxu0 0.0
        %318 = vmatprep.subr.mxu0 0.0
        %319 = vmatpush1.msra.mxu0 0.0
        %320 = vmatprep.subr.mxu0 0.0
        %321 = vmatpush1.msra.mxu0 0.0
        %322 = vmatprep.subr.mxu0 0.0
        %323 = vmatpush1.msra.mxu0 0.0
        %324 = vmatprep.subr.mxu0 0.0
        %325 = vmatpush1.msra.mxu0 %v279
        %326 = vmatprep.subr.mxu0 0.0
        %327 = vmatpush1.msra.mxu0 %v278
        %328 = vmatprep.subr.mxu0 0.0
        %329 = vmatpush1.msra.mxu0 %v277
        %330 = vmatprep.subr.mxu0 0.0
        %331 = vmatpush1.msra.mxu0 %v276
        %332 = vmatprep.subr.mxu0 0.0
        %333 = vmatpush2.msra.mxu0 0.0
        %334 = vmatprep.subr.mxu0 0.0
        %335 = vmatpush2.msra.mxu0 0.0
        %336 = vmatprep.subr.mxu0 0.0
        %337 = vmatpush2.msra.mxu0 0.0
        %338 = vmatprep.subr.mxu0 0.0
        %339 = vmatpush2.msra.mxu0 0.0
        %340 = vmatprep.subr.mxu0 0.0
        %341 = vmatpush2.msra.mxu0 0.0
        %342 = vmatprep.subr.mxu0 0.0
        %343 = vmatpush2.msra.mxu0 0.0
        %344 = vmatprep.subr.mxu0 0.0
        %345 = vmatpush2.msra.mxu0 0.0
        %346 = vmatprep.subr.mxu0 0.0
        %347 = vmatpush2.msra.mxu0 0.0
        %348 = vmatprep.subr.mxu0 0.0
        %349 = vmatpush2.msra.mxu0 0.0
        %350 = vmatprep.subr.mxu0 0.0
        %351 = vmatpush2.msra.mxu0 0.0
        %352 = vmatprep.subr.mxu0 0.0
        %353 = vmatpush2.msra.mxu0 0.0
        %354 = vmatprep.subr.mxu0 0.0
        %355 = vmatpush2.msra.mxu0 0.0
        %356 = vmatprep.subr.mxu0 0.0
        %357 = vmatpush2.msra.mxu0 0.0
        %358 = vmatprep.subr.mxu0 0.0
        %359 = vmatpush2.msra.mxu0 0.0
        %360 = vmatprep.subr.mxu0 0.0
        %361 = vmatpush2.msra.mxu0 0.0
        %362 = vmatprep.subr.mxu0 0.0
        %363 = vmatpush2.msra.mxu0 0.0
        %364 = vmatprep.mubr.f32.mxu0 0.0
        %365 = vmatmul.mubr.f32.gmra.mxu0 %v289
        %v366 = vpop.f32.mrf.mxu0
        %v367 = vadd.f32 %v285, %v366
        %v368 = vpop.f32.mrf.mxu0
        %369 = vmatprep.mubr.f32.mxu0 0.0
        %370 = vmatmul.mubr.f32.gmra.mxu0 %v292
        %v371 = vpop.f32.mrf.mxu0
        %v372 = vadd.f32 %v285, %v371
        %v373 = vpop.f32.mrf.mxu0
        %374 = vmatprep.mubr.f32.mxu0 0.0
        %375 = vmatmul.mubr.f32.gmra.mxu0 %v295
        %v376 = vpop.f32.mrf.mxu0
        %v377 = vadd.f32 %v285, %v376
        %v378 = vpop.f32.mrf.mxu0
        %379 = vmatprep.mubr.f32.mxu0 0.0
        %380 = vmatmul.mubr.f32.gmra.mxu0 %v298
        %v381 = vpop.f32.mrf.mxu0
        %v382 = vadd.f32 %v285, %v381
        %v383 = vpop.f32.mrf.mxu0
        %384 = vdwg.mxu0
        %389 = vrot.lane.b32.xlu0 %v367, 96
        %v390 = vpop.permute.xlu0 %389
        %391 = vrot.lane.b32.xlu0 %v372, 96
        %v392 = vpop.permute.xlu0 %391
        %393 = vrot.lane.b32.xlu0 %v377, 96
        %v394 = vpop.permute.xlu0 %393
        %395 = vrot.lane.b32.xlu0 %v382, 96
        %v396 = vpop.permute.xlu0 %395
        %v397 = vsel %vm287, %v367, 0
        %v399 = vsel %vm287, %v372, 0
        %v401 = vsel %vm287, %v377, 0
        %v403 = vsel %vm287, %v382, 0
        %v405 = vsel %vm287, %v390, 0
        %v407 = vsel %vm287, %v392, 0
        %v409 = vsel %vm287, %v394, 0
        %v411 = vsel %vm287, %v396, 0
        %413 = vmatprep.subr.mxu0 0.0
        %414 = vmatpush1.xpose.msra.mxu0 0.0
        %415 = vmatprep.subr.mxu0 0.0
        %416 = vmatpush1.xpose.msra.mxu0 0.0
        %417 = vmatprep.subr.mxu0 0.0
        %418 = vmatpush1.xpose.msra.mxu0 0.0
        %419 = vmatprep.subr.mxu0 0.0
        %420 = vmatpush1.xpose.msra.mxu0 0.0
        %421 = vmatprep.subr.mxu0 0.0
        %422 = vmatpush1.xpose.msra.mxu0 0.0
        %423 = vmatprep.subr.mxu0 0.0
        %424 = vmatpush1.xpose.msra.mxu0 0.0
        %425 = vmatprep.subr.mxu0 0.0
        %426 = vmatpush1.xpose.msra.mxu0 0.0
        %427 = vmatprep.subr.mxu0 0.0
        %428 = vmatpush1.xpose.msra.mxu0 0.0
        %429 = vmatprep.subr.mxu0 0.0
        %430 = vmatpush1.xpose.msra.mxu0 0.0
        %431 = vmatprep.subr.mxu0 0.0
        %432 = vmatpush1.xpose.msra.mxu0 0.0
        %433 = vmatprep.subr.mxu0 0.0
        %434 = vmatpush1.xpose.msra.mxu0 0.0
        %435 = vmatprep.subr.mxu0 0.0
        %436 = vmatpush1.xpose.msra.mxu0 0.0
        %437 = vmatprep.subr.mxu0 0.0
        %438 = vmatpush1.xpose.msra.mxu0 %v411
        %439 = vmatprep.subr.mxu0 0.0
        %440 = vmatpush1.xpose.msra.mxu0 %v409
        %441 = vmatprep.subr.mxu0 0.0
        %442 = vmatpush1.xpose.msra.mxu0 %v407
        %443 = vmatprep.subr.mxu0 0.0
        %444 = vmatpush1.xpose.msra.mxu0 %v405
        %445 = vmatprep.subr.mxu0 0.0
        %446 = vmatpush2.xpose.msra.mxu0 0.0
        %447 = vmatprep.subr.mxu0 0.0
        %448 = vmatpush2.xpose.msra.mxu0 0.0
        %449 = vmatprep.subr.mxu0 0.0
        %450 = vmatpush2.xpose.msra.mxu0 0.0
        %451 = vmatprep.subr.mxu0 0.0
        %452 = vmatpush2.xpose.msra.mxu0 0.0
        %453 = vmatprep.subr.mxu0 0.0
        %454 = vmatpush2.xpose.msra.mxu0 0.0
        %455 = vmatprep.subr.mxu0 0.0
        %456 = vmatpush2.xpose.msra.mxu0 0.0
        %457 = vmatprep.subr.mxu0 0.0
        %458 = vmatpush2.xpose.msra.mxu0 0.0
        %459 = vmatprep.subr.mxu0 0.0
        %460 = vmatpush2.xpose.msra.mxu0 0.0
        %461 = vmatprep.subr.mxu0 0.0
        %462 = vmatpush2.xpose.msra.mxu0 0.0
        %463 = vmatprep.subr.mxu0 0.0
        %464 = vmatpush2.xpose.msra.mxu0 0.0
        %465 = vmatprep.subr.mxu0 0.0
        %466 = vmatpush2.xpose.msra.mxu0 0.0
        %467 = vmatprep.subr.mxu0 0.0
        %468 = vmatpush2.xpose.msra.mxu0 0.0
        %469 = vmatprep.subr.mxu0 0.0
        %470 = vmatpush2.xpose.msra.mxu0 0.0
        %471 = vmatprep.subr.mxu0 0.0
        %472 = vmatpush2.xpose.msra.mxu0 0.0
        %473 = vmatprep.subr.mxu0 0.0
        %474 = vmatpush2.xpose.msra.mxu0 0.0
        %475 = vmatprep.subr.mxu0 0.0
        %476 = vmatpush2.xpose.msra.mxu0 0.0
        %477 = vmatprep.mubr.f32.mxu0 0.0
        %478 = vmatmul.mubr.f32.gmra.mxu0 %v397
        %v479 = vpop.f32.mrf.mxu0
        %v480 = vadd.f32 0.0, %v479
        %v481 = vpop.f32.mrf.mxu0
        %482 = vmatprep.mubr.f32.mxu0 0.0
        %483 = vmatmul.mubr.f32.gmra.mxu0 %v399
        %v484 = vpop.f32.mrf.mxu0
        %v485 = vadd.f32 0.0, %v484
        %v486 = vpop.f32.mrf.mxu0
        %487 = vmatprep.mubr.f32.mxu0 0.0
        %488 = vmatmul.mubr.f32.gmra.mxu0 %v401
        %v489 = vpop.f32.mrf.mxu0
        %v490 = vadd.f32 0.0, %v489
        %v491 = vpop.f32.mrf.mxu0
        %492 = vmatprep.mubr.f32.mxu0 0.0
        %493 = vmatmul.mubr.f32.gmra.mxu0 %v403
        %v494 = vpop.f32.mrf.mxu0
        %v495 = vadd.f32 0.0, %v494
        %v496 = vpop.f32.mrf.mxu0
        %497 = vdwg.mxu0
        %v498 = vsel %vm287, %v480, -inf
        %499 = vmax.xlane.f32.xlu0 %v498
        %v500 = vpop.xlane.xlu0 %499
        %v501 = vsel %vm287, %v485, -inf
        %502 = vmax.xlane.f32.xlu0 %v501
        %v503 = vpop.xlane.xlu0 %502
        %v504 = vsel %vm287, %v490, -inf
        %505 = vmax.xlane.f32.xlu0 %v504
        %v506 = vpop.xlane.xlu0 %505
        %v507 = vsel %vm287, %v495, -inf
        %508 = vmax.xlane.f32.xlu0 %v507
        %v509 = vpop.xlane.xlu0 %508
        %v510 = vsub.f32 %v480, %v500
        %v511 = vsub.f32 %v485, %v503
        %v512 = vsub.f32 %v490, %v506
        %v513 = vsub.f32 %v495, %v509
        %v514 = vmul.f32 %v510, 1.442695
        %v515 = vpow.pop %v514
        %v516 = vmul.f32 %v511, 1.442695
        %v517 = vpow.pop %v516
        %v518 = vmul.f32 %v512, 1.442695
        %v519 = vpow.pop %v518
        %v520 = vmul.f32 %v513, 1.442695
        %v521 = vpow.pop %v520
        %v522 = vsel %vm287, %v515, 0.0
        %523 = vadd.xlane.f32.xlu0 %v522
        %v524 = vpop.xlane.xlu0 %523
        %v525 = vsel %vm287, %v517, 0.0
        %526 = vadd.xlane.f32.xlu0 %v525
        %v527 = vpop.xlane.xlu0 %526
        %v528 = vsel %vm287, %v519, 0.0
        %529 = vadd.xlane.f32.xlu0 %v528
        %v530 = vpop.xlane.xlu0 %529
        %v531 = vsel %vm287, %v521, 0.0
        %532 = vadd.xlane.f32.xlu0 %v531
        %v533 = vpop.xlane.xlu0 %532
        %v534 = vrcp.pop %v524
        %v535 = vrcp.pop %v527
        %v536 = vrcp.pop %v530
        %v537 = vrcp.pop %v533
        %v538 = vmul.f32 %v515, %v534
        %v539 = vmul.f32 %v517, %v535
        %v540 = vmul.f32 %v519, %v536
        %v541 = vmul.f32 %v521, %v537
        %542 = vrot.lane.b32.xlu0 %v367, 64
        %v543 = vpop.permute.xlu0 %542
        %544 = vrot.lane.b32.xlu0 %v372, 64
        %v545 = vpop.permute.xlu0 %544
        %546 = vrot.lane.b32.xlu0 %v377, 64
        %v547 = vpop.permute.xlu0 %546
        %548 = vrot.lane.b32.xlu0 %v382, 64
        %v549 = vpop.permute.xlu0 %548
        %v554 = vmul.f32 %v538, %v543
        %v555 = vmul.f32 %v539, %v545
        %v556 = vmul.f32 %v540, %v547
        %v557 = vmul.f32 %v541, %v549
        %v558 = vld [vmem:[#allocation7] sm:$0xff]
        %v559 = vld [vmem:[#allocation7 + $0x8] sm:$0xff]
        %v560 = vld [vmem:[#allocation7 + $0x10] sm:$0xff]
        %v561 = vld [vmem:[#allocation7 + $0x18] sm:$0xff]
        %v562 = vld [vmem:[%s4] sm:$0x1]
        %v564 = vlaneseq
        %v565 = vshrl.u32 %v564, 7
        %v566 = vsub.s32 0, %v565
        %v567 = vrot.slane %v562, %v566
        %v570 = vsel %vm287, %v554, 0
        %v573 = vsel %vm287, %v555, 0
        %v576 = vsel %vm287, %v556, 0
        %v579 = vsel %vm287, %v557, 0
        %581 = vmatprep.subr.mxu0 0.0
        %582 = vmatpush1.msra.mxu0 0.0
        %583 = vmatprep.subr.mxu0 0.0
        %584 = vmatpush1.msra.mxu0 0.0
        %585 = vmatprep.subr.mxu0 0.0
        %586 = vmatpush1.msra.mxu0 0.0
        %587 = vmatprep.subr.mxu0 0.0
        %588 = vmatpush1.msra.mxu0 0.0
        %589 = vmatprep.subr.mxu0 0.0
        %590 = vmatpush1.msra.mxu0 0.0
        %591 = vmatprep.subr.mxu0 0.0
        %592 = vmatpush1.msra.mxu0 0.0
        %593 = vmatprep.subr.mxu0 0.0
        %594 = vmatpush1.msra.mxu0 0.0
        %595 = vmatprep.subr.mxu0 0.0
        %596 = vmatpush1.msra.mxu0 0.0
        %597 = vmatprep.subr.mxu0 0.0
        %598 = vmatpush1.msra.mxu0 0.0
        %599 = vmatprep.subr.mxu0 0.0
        %600 = vmatpush1.msra.mxu0 0.0
        %601 = vmatprep.subr.mxu0 0.0
        %602 = vmatpush1.msra.mxu0 0.0
        %603 = vmatprep.subr.mxu0 0.0
        %604 = vmatpush1.msra.mxu0 0.0
        %605 = vmatprep.subr.mxu0 0.0
        %606 = vmatpush1.msra.mxu0 %v561
        %607 = vmatprep.subr.mxu0 0.0
        %608 = vmatpush1.msra.mxu0 %v560
        %609 = vmatprep.subr.mxu0 0.0
        %610 = vmatpush1.msra.mxu0 %v559
        %611 = vmatprep.subr.mxu0 0.0
        %612 = vmatpush1.msra.mxu0 %v558
        %613 = vmatprep.subr.mxu0 0.0
        %614 = vmatpush2.msra.mxu0 0.0
        %615 = vmatprep.subr.mxu0 0.0
        %616 = vmatpush2.msra.mxu0 0.0
        %617 = vmatprep.subr.mxu0 0.0
        %618 = vmatpush2.msra.mxu0 0.0
        %619 = vmatprep.subr.mxu0 0.0
        %620 = vmatpush2.msra.mxu0 0.0
        %621 = vmatprep.subr.mxu0 0.0
        %622 = vmatpush2.msra.mxu0 0.0
        %623 = vmatprep.subr.mxu0 0.0
        %624 = vmatpush2.msra.mxu0 0.0
        %625 = vmatprep.subr.mxu0 0.0
        %626 = vmatpush2.msra.mxu0 0.0
        %627 = vmatprep.subr.mxu0 0.0
        %628 = vmatpush2.msra.mxu0 0.0
        %629 = vmatprep.subr.mxu0 0.0
        %630 = vmatpush2.msra.mxu0 0.0
        %631 = vmatprep.subr.mxu0 0.0
        %632 = vmatpush2.msra.mxu0 0.0
        %633 = vmatprep.subr.mxu0 0.0
        %634 = vmatpush2.msra.mxu0 0.0
        %635 = vmatprep.subr.mxu0 0.0
        %636 = vmatpush2.msra.mxu0 0.0
        %637 = vmatprep.subr.mxu0 0.0
        %638 = vmatpush2.msra.mxu0 0.0
        %639 = vmatprep.subr.mxu0 0.0
        %640 = vmatpush2.msra.mxu0 0.0
        %641 = vmatprep.subr.mxu0 0.0
        %642 = vmatpush2.msra.mxu0 0.0
        %643 = vmatprep.subr.mxu0 0.0
        %644 = vmatpush2.msra.mxu0 0.0
        %645 = vmatprep.mubr.f32.mxu0 0.0
        %646 = vmatmul.mubr.f32.gmra.mxu0 %v570
        %v647 = vpop.f32.mrf.mxu0
        %v648 = vadd.f32 %v567, %v647
        %v649 = vpop.f32.mrf.mxu0
        %650 = vmatprep.mubr.f32.mxu0 0.0
        %651 = vmatmul.mubr.f32.gmra.mxu0 %v573
        %v652 = vpop.f32.mrf.mxu0
        %v653 = vadd.f32 %v567, %v652
        %v654 = vpop.f32.mrf.mxu0
        %655 = vmatprep.mubr.f32.mxu0 0.0
        %656 = vmatmul.mubr.f32.gmra.mxu0 %v576
        %v657 = vpop.f32.mrf.mxu0
        %v658 = vadd.f32 %v567, %v657
        %v659 = vpop.f32.mrf.mxu0
        %660 = vmatprep.mubr.f32.mxu0 0.0
        %661 = vmatmul.mubr.f32.gmra.mxu0 %v579
        %v662 = vpop.f32.mrf.mxu0
        %v663 = vadd.f32 %v567, %v662
        %v664 = vpop.f32.mrf.mxu0
        %665 = vdwg.mxu0
        %666 = vst [vmem:[%s271] sm:$0xff] %v648
        %667 = vst [vmem:[%s271 + $0x8] sm:$0xff] %v653
        %668 = vst [vmem:[%s271 + $0x10] sm:$0xff] %v658
        %669 = vst [vmem:[%s271 + $0x18] sm:$0xff] %v663
        %s670 = sand.u32 %s141, 1
        %s671 = scalar_lea.sflag [#allocation4], %s670
        %s672 = sand.u32 %s141, 1
        %s673 = smul.addr %s672, 32
        %s674 = scalar_lea.vmem [#allocation8], %s673
        // Predicated region
        $region53: #{tpu_custom_call.1} parent=39 // pred_check
          %p675 = pneg %p151
        $region54: #{tpu_custom_call.1} parent=39 // pred_check_branch
          %677 = sbr.rel (%p675) target = $region56
        $region55: #{tpu_custom_call.1} parent=39 // pred_region
          %s679 = ssub.s32 512, 512
          %680 = vsyncadd %s671, %s679
          %s681 = smul.addr %s23, 4
          %s682 = smul.addr %s681, 128
          %s683 = scalar_lea.hbm %s5, %s682
          %s684 = sshll.u32 %s674, 4
          %s685 = int_to_ptr.vmem [resolvable:$true] %s684
          %690 = dma.vmem_to_hbm [thread:$0]  %s685, 512, %s683, %s671, 128, 128, 8
        $region56: #{tpu_custom_call.1} parent=39 // pred_fallthru
          _
      $region40: #{tpu_custom_call.1} parent=5 // pred_fallthru
        _
      %p691 = scmp.le.s32.totalorder 2, %s18
      // Predicated region
      $region57: #{tpu_custom_call.1} parent=5 // pred_check
        %p692 = pneg %p691
      $region58: #{tpu_custom_call.1} parent=5 // pred_check_branch
        %694 = sbr.rel (%p692) target = $region60
      $region59: #{tpu_custom_call.1} parent=5 // pred_region
        %s695 = ssub.s32 %s18, 2
        // Predicated region
        $region61: #{tpu_custom_call.1} parent=59 // pred_check
          %p696 = pneg %p157
        $region62: #{tpu_custom_call.1} parent=59 // pred_check_branch
          %698 = sbr.rel (%p696) target = $region64
        $region63: #{tpu_custom_call.1} parent=59 // pred_region
          %s699 = sand.u32 %s142, 1
          %s700 = scalar_lea.sflag [#allocation4], %s699
          %s701 = sand.u32 %s142, 1
          %s702 = smul.addr %s701, 32
          %s703 = scalar_lea.vmem [#allocation8], %s702
          %704 = dma.done %s700, 512
        $region64: #{tpu_custom_call.1} parent=59 // pred_fallthru
          _
      $region60: #{tpu_custom_call.1} parent=5 // pred_fallthru
        _
    $region6: #{tpu_custom_call.1} parent=1 // loop_footer
      %s22 = sadd.s32 1, %s18
    $region7: #{tpu_custom_call.1} parent=1 // loop_footer_branch
      %17 = sbr.rel target = $region3
    $region8: #{tpu_custom_call.1} parent=1 // loop_exit
      _
    %705 = vsyncpa [#allocation3], 1
    %s706 = scalar_lea.sflag [#allocation3], 1
    %707 = vsyncpa %s706, 1
    %708 = vsyncpa [#allocation6], 1
    %709 = vsyncpa [#allocation4], 1
    %s710 = scalar_lea.sflag [#allocation4], 1
    %711 = vsyncpa %s710, 1

</llo_original>
